<compile_context>
chip_gen: v6e
topology: v6e:2x2x1
jax: 0.10.0
libtpu: 0.0.40
codegen_flags: <defaults>
</compile_context>

<pallas_src>
import jax
import jax.numpy as jnp
from jax.experimental import pallas as pl
from jax.experimental.pallas import tpu as pltpu

HIDDEN_DIM = 64      # fixed by the module
TM_MAX = 512         # max batch rows per grid step


def _mlp_kernel(x_ref, w1_ref, b1_ref, w2_ref, b2_ref, w3_ref, b3_ref, o_ref):
    # x tile arrives f32; cast to bf16 in VMEM so all MXU operands are bf16.
    x = x_ref[...].astype(jnp.bfloat16)
    h1 = jnp.dot(x, w1_ref[...], preferred_element_type=jnp.float32)
    h1 = jnp.maximum(h1 + b1_ref[...], 0.0).astype(jnp.bfloat16)
    h2 = jnp.dot(h1, w2_ref[...], preferred_element_type=jnp.float32)
    h2 = jnp.maximum(h2 + b2_ref[...], 0.0).astype(jnp.bfloat16)
    out = jnp.dot(h2, w3_ref[...], preferred_element_type=jnp.float32) + b3_ref[...]
    o_ref[...] = out.astype(o_ref.dtype)


def _round_up(x, m):
    return ((x + m - 1) // m) * m


def _pick_tm(batch):
    """Batch tile: as large as useful, but keep >= 2 grid steps when the
    batch allows it so the 'parallel' axis can be sharded across 2 TCs."""
    if batch <= 8:
        return batch                                  # block == full dim (legal)
    tm = min(TM_MAX, _round_up(pl.cdiv(batch, 2), 8))  # multiple of 8 sublanes
    return max(tm, 8)


def prepare_params(w1, b1, w2, b2, w3, b3):
    """One-time dtype plumbing, hoisted out of the per-call path:
    weights -> bf16 MXU operands, biases -> f32 (1, N) row vectors."""
    as_row = lambda b: b.reshape(1, -1).astype(jnp.float32)
    return (w1.astype(jnp.bfloat16), as_row(b1),
            w2.astype(jnp.bfloat16), as_row(b2),
            w3.astype(jnp.bfloat16), as_row(b3))


@jax.jit
def mlp_forward(x, w1, b1, w2, b2, w3, b3):
    batch, d_in = x.shape
    hidden = w1.shape[1]
    out_dim = w3.shape[1]

    tm = _pick_tm(batch)
    grid = (pl.cdiv(batch, tm),)

    # Advisory cost for XLA's scheduler around the custom call.
    flops = 2 * batch * (d_in * hidden + hidden * hidden + hidden * out_dim)
    bytes_accessed = (
        batch * d_in * 4                                              # x (f32)
        + (d_in * hidden + hidden * hidden + hidden * out_dim) * 2    # weights (bf16)
        + (2 * hidden + out_dim) * 4                                  # biases (f32)
        + batch * out_dim * 4                                         # out (f32)
    )
    cost = pl.CostEstimate(flops=flops, transcendentals=0,
                           bytes_accessed=bytes_accessed)

    return pl.pallas_call(
        _mlp_kernel,
        out_shape=jax.ShapeDtypeStruct((batch, out_dim), jnp.float32),
        grid=grid,
        in_specs=[
            pl.BlockSpec((tm, d_in), lambda i: (i, 0)),         # x: streamed
            pl.BlockSpec((d_in, hidden), lambda i: (0, 0)),     # w1: resident
            pl.BlockSpec((1, hidden), lambda i: (0, 0)),        # b1: resident
            pl.BlockSpec((hidden, hidden), lambda i: (0, 0)),   # w2: resident
            pl.BlockSpec((1, hidden), lambda i: (0, 0)),        # b2: resident
            pl.BlockSpec((hidden, out_dim), lambda i: (0, 0)),  # w3: resident
            pl.BlockSpec((1, out_dim), lambda i: (0, 0)),       # b3: resident
        ],
        # True out_dim-wide block (== full last dim): no lane padding, no
        # post-slice; partial final batch block is masked on writeback.
        out_specs=pl.BlockSpec((tm, out_dim), lambda i: (i, 0)),
        compiler_params=pltpu.CompilerParams(
            dimension_semantics=("parallel",),
        ),
        cost_estimate=cost,
    )(x, w1, b1, w2, b2, w3, b3)


def init_params(key, input_dim, hidden_dim, out_dim):
    """Deterministic init mimicking PyTorch nn.Linear default (uniform +-1/sqrt(fan_in))."""

    def linear(k, fan_in, fan_out):
        kw, kb = jax.random.split(k)
        bound = 1.0 / jnp.sqrt(fan_in)
        # Stored as (fan_in, fan_out) so the kernel computes x @ W (== x @ W_pt.T).
        w = jax.random.uniform(kw, (fan_in, fan_out), jnp.float32, -bound, bound)
        b = jax.random.uniform(kb, (fan_out,), jnp.float32, -bound, bound)
        return w, b

    k1, k2, k3 = jax.random.split(key, 3)
    w1, b1 = linear(k1, input_dim, hidden_dim)
    w2, b2 = linear(k2, hidden_dim, hidden_dim)
    w3, b3 = linear(k3, hidden_dim, out_dim)
    return w1, b1, w2, b2, w3, b3


def reference_forward(x, w1, b1, w2, b2, w3, b3):
    h1 = jnp.maximum(x @ w1 + b1, 0.0)
    h2 = jnp.maximum(h1 @ w2 + b2, 0.0)
    return h2 @ w3 + b3


if __name__ == "__main__":
    # Module-implied sizes: hidden_dim fixed at 64; input_dim / out_dim free.
    input_dim, out_dim = 32, 16
    batch = 200  # not a multiple of the tile -> exercises partial-block masking

    key = jax.random.PRNGKey(0)
    kx, kp = jax.random.split(key)
    x = jax.random.normal(kx, (batch, input_dim), jnp.float32)
    raw_params = init_params(kp, input_dim, HIDDEN_DIM, out_dim)
    params = prepare_params(*raw_params)   # one-time cast, outside per-call path

    out = mlp_forward(x, *params)
    jax.block_until_ready(out)

    ref = reference_forward(x, *raw_params)  # f32 reference
    assert out.shape == (batch, out_dim)
    # bf16 matmul operands with f32 accumulation -> loose tolerance vs f32 ref.
    assert jnp.allclose(out, ref, atol=5e-2, rtol=5e-2), (
        float(jnp.max(jnp.abs(out - ref))))
    print("KERNEL_OK")
</pallas_src>

<mosaic_0001>
module attributes {stable_mosaic.version = 11 : i64} {
  func.func @_mlp_kernel(%arg0: i32, %arg1: memref<104x32xf32, #tpu.memory_space<vmem>>, %arg2: memref<32x64xbf16, #tpu.memory_space<vmem>>, %arg3: memref<1x64xf32, #tpu.memory_space<vmem>>, %arg4: memref<64x64xbf16, #tpu.memory_space<vmem>>, %arg5: memref<1x64xf32, #tpu.memory_space<vmem>>, %arg6: memref<64x16xbf16, #tpu.memory_space<vmem>>, %arg7: memref<1x16xf32, #tpu.memory_space<vmem>>, %arg8: memref<104x16xf32, #tpu.memory_space<vmem>>) attributes {dimension_semantics = [#tpu.dimension_semantics<parallel>], iteration_bounds = array<i64: 2>, scalar_prefetch = 0 : i64, scratch_operands = 0 : i64, tpu.core_type = #tpu.core_type<tc>, window_params = [{transform_indices = @transform_0, window_bounds = array<i64: 104, 32>}, {pipeline_mode = #tpu.pipeline_mode<synchronous>, transform_indices = @transform_1, window_bounds = array<i64: 32, 64>}, {pipeline_mode = #tpu.pipeline_mode<synchronous>, transform_indices = @transform_2, window_bounds = array<i64: 1, 64>}, {pipeline_mode = #tpu.pipeline_mode<synchronous>, transform_indices = @transform_3, window_bounds = array<i64: 64, 64>}, {pipeline_mode = #tpu.pipeline_mode<synchronous>, transform_indices = @transform_4, window_bounds = array<i64: 1, 64>}, {pipeline_mode = #tpu.pipeline_mode<synchronous>, transform_indices = @transform_5, window_bounds = array<i64: 64, 16>}, {pipeline_mode = #tpu.pipeline_mode<synchronous>, transform_indices = @transform_6, window_bounds = array<i64: 1, 16>}, {transform_indices = @transform_7, window_bounds = array<i64: 104, 16>}]} {
    %c0 = arith.constant 0 : index
    %c0_0 = arith.constant 0 : index
    %0 = vector.load %arg1[%c0, %c0_0] : memref<104x32xf32, #tpu.memory_space<vmem>>, vector<104x32xf32>
    %1 = arith.truncf %0 : vector<104x32xf32> to vector<104x32xbf16>
    %c0_1 = arith.constant 0 : index
    %c0_2 = arith.constant 0 : index
    %2 = vector.load %arg2[%c0_1, %c0_2] : memref<32x64xbf16, #tpu.memory_space<vmem>>, vector<32x64xbf16>
    %cst = arith.constant dense<0.000000e+00> : vector<104x64xf32>
    %3 = tpu.matmul %1, %2, %cst {dimension_numbers = #tpu.dot_dimension_numbers<[1], [0], [0], [1], [0, 0, 1, 1], [], []>} : vector<104x32xbf16>, vector<32x64xbf16>, vector<104x64xf32> -> vector<104x64xf32>
    %c0_3 = arith.constant 0 : index
    %c0_4 = arith.constant 0 : index
    %4 = vector.load %arg3[%c0_3, %c0_4] : memref<1x64xf32, #tpu.memory_space<vmem>>, vector<1x64xf32>
    %5 = vector.broadcast %4 : vector<1x64xf32> to vector<104x64xf32>
    %6 = arith.addf %3, %5 : vector<104x64xf32>
    %cst_5 = arith.constant 0.000000e+00 : f32
    %7 = vector.broadcast %cst_5 : f32 to vector<104x64xf32>
    %8 = arith.maximumf %6, %7 : vector<104x64xf32>
    %9 = arith.truncf %8 : vector<104x64xf32> to vector<104x64xbf16>
    %c0_6 = arith.constant 0 : index
    %c0_7 = arith.constant 0 : index
    %10 = vector.load %arg4[%c0_6, %c0_7] : memref<64x64xbf16, #tpu.memory_space<vmem>>, vector<64x64xbf16>
    %cst_8 = arith.constant dense<0.000000e+00> : vector<104x64xf32>
    %11 = tpu.matmul %9, %10, %cst_8 {dimension_numbers = #tpu.dot_dimension_numbers<[1], [0], [0], [1], [0, 0, 1, 1], [], []>} : vector<104x64xbf16>, vector<64x64xbf16>, vector<104x64xf32> -> vector<104x64xf32>
    %c0_9 = arith.constant 0 : index
    %c0_10 = arith.constant 0 : index
    %12 = vector.load %arg5[%c0_9, %c0_10] : memref<1x64xf32, #tpu.memory_space<vmem>>, vector<1x64xf32>
    %13 = vector.broadcast %12 : vector<1x64xf32> to vector<104x64xf32>
    %14 = arith.addf %11, %13 : vector<104x64xf32>
    %cst_11 = arith.constant 0.000000e+00 : f32
    %15 = vector.broadcast %cst_11 : f32 to vector<104x64xf32>
    %16 = arith.maximumf %14, %15 : vector<104x64xf32>
    %17 = arith.truncf %16 : vector<104x64xf32> to vector<104x64xbf16>
    %c0_12 = arith.constant 0 : index
    %c0_13 = arith.constant 0 : index
    %18 = vector.load %arg6[%c0_12, %c0_13] : memref<64x16xbf16, #tpu.memory_space<vmem>>, vector<64x16xbf16>
    %cst_14 = arith.constant dense<0.000000e+00> : vector<104x16xf32>
    %19 = tpu.matmul %17, %18, %cst_14 {dimension_numbers = #tpu.dot_dimension_numbers<[1], [0], [0], [1], [0, 0, 1, 1], [], []>} : vector<104x64xbf16>, vector<64x16xbf16>, vector<104x16xf32> -> vector<104x16xf32>
    %c0_15 = arith.constant 0 : index
    %c0_16 = arith.constant 0 : index
    %20 = vector.load %arg7[%c0_15, %c0_16] : memref<1x16xf32, #tpu.memory_space<vmem>>, vector<1x16xf32>
    %21 = vector.broadcast %20 : vector<1x16xf32> to vector<104x16xf32>
    %22 = arith.addf %19, %21 : vector<104x16xf32>
    %c0_17 = arith.constant 0 : index
    %c0_18 = arith.constant 0 : index
    %23 = vector.load %arg8[%c0_17, %c0_18] : memref<104x16xf32, #tpu.memory_space<vmem>>, vector<104x16xf32>
    tpu.vector_store %arg8[%c0_17, %c0_18], %22 {strides = array<i32>} : memref<104x16xf32, #tpu.memory_space<vmem>>, vector<104x16xf32>,
    return
  }
  func.func @transform_0(%arg0: i32) -> (i32, i32) {
    %c0_i32 = arith.constant 0 : i32
    %c0_i32_0 = arith.constant 0 : i32
    return %arg0, %c0_i32 : i32, i32
  }
  func.func @transform_1(%arg0: i32) -> (i32, i32) {
    %c0_i32 = arith.constant 0 : i32
    %c0_i32_0 = arith.constant 0 : i32
    %c0_i32_1 = arith.constant 0 : i32
    return %c0_i32, %c0_i32_0 : i32, i32
  }
  func.func @transform_2(%arg0: i32) -> (i32, i32) {
    %c0_i32 = arith.constant 0 : i32
    %c0_i32_0 = arith.constant 0 : i32
    %c0_i32_1 = arith.constant 0 : i32
    return %c0_i32, %c0_i32_0 : i32, i32
  }
  func.func @transform_3(%arg0: i32) -> (i32, i32) {
    %c0_i32 = arith.constant 0 : i32
    %c0_i32_0 = arith.constant 0 : i32
    %c0_i32_1 = arith.constant 0 : i32
    return %c0_i32, %c0_i32_0 : i32, i32
  }
  func.func @transform_4(%arg0: i32) -> (i32, i32) {
    %c0_i32 = arith.constant 0 : i32
    %c0_i32_0 = arith.constant 0 : i32
    %c0_i32_1 = arith.constant 0 : i32
    return %c0_i32, %c0_i32_0 : i32, i32
  }
  func.func @transform_5(%arg0: i32) -> (i32, i32) {
    %c0_i32 = arith.constant 0 : i32
    %c0_i32_0 = arith.constant 0 : i32
    %c0_i32_1 = arith.constant 0 : i32
    return %c0_i32, %c0_i32_0 : i32, i32
  }
  func.func @transform_6(%arg0: i32) -> (i32, i32) {
    %c0_i32 = arith.constant 0 : i32
    %c0_i32_0 = arith.constant 0 : i32
    %c0_i32_1 = arith.constant 0 : i32
    return %c0_i32, %c0_i32_0 : i32, i32
  }
  func.func @transform_7(%arg0: i32) -> (i32, i32) {
    %c0_i32 = arith.constant 0 : i32
    %c0_i32_0 = arith.constant 0 : i32
    return %arg0, %c0_i32 : i32, i32
  }
}

</mosaic_0001>

<llo_original>
// kernel: mlp_forward.1
$region0: #{mlp_forward.1}
  #allocation0 [shape = 'u32[]', space=smem, size = 0x4, offset = 0x4, fixed_abs, tag = 'smem constant byte address 0x4 - core index']
  #allocation1 [shape = 'u32[144,128]{1,0:T(1,128)}', space=vmem, size = 0x12000, scoped, tag = 'internal scratch']
  %s0 = inlined_call_operand.vmem [shape: f32[200,32], index: 0, kind: input, shape index: {}]
  %s1 = inlined_call_operand.vmem [shape: bf16[32,64], index: 1, kind: input, shape index: {}]
  %s2 = inlined_call_operand.vmem [shape: f32[1,64], index: 2, kind: input, shape index: {}]
  %s3 = inlined_call_operand.vmem [shape: bf16[64,64], index: 3, kind: input, shape index: {}]
  %s4 = inlined_call_operand.vmem [shape: f32[1,64], index: 4, kind: input, shape index: {}]
  %s5 = inlined_call_operand.vmem [shape: bf16[64,16], index: 5, kind: input, shape index: {}]
  %s6 = inlined_call_operand.vmem [shape: f32[1,16], index: 6, kind: input, shape index: {}]
  %s7 = inlined_call_operand.vmem [shape: f32[200,16], index: 7, kind: output, shape index: {}]
  %s8 = sld [smem:[#allocation0]]
  $region109: #{mlp_forward.1} parent=0
    _
  %s10 = ssub.s32 1, %s8
  %s11 = scalar_select 0, %s10, %s8
  $region1: #{mlp_forward.1} parent=0
    #allocation2 [shape = 'u8[106496]{0}', space=vmem, size = 0x1a000, scoped, tag = 'output window, operand 0']
    loop: start=0, step=1, limit=4
    $region2: #{mlp_forward.1} parent=1 // loop_pre_header
      _
    $region3: #{mlp_forward.1} parent=1 // loop_header
      %s13 = sphi 0, %s17
      %p14 = scmp.ge.s32.totalorder %s13, 4
      %s23 = sphi 0, %s25
      %s26 = sphi 0, %s23
      %s27 = sphi 0, %s26
      %s43 = sphi 0, %s27
      %s47 = sphi 0, %s47
      %s49 = sphi 0, %s47
      %s50 = sphi 0, %s49
      %s64 = sphi 0, %s50
      %s68 = sphi 0, %s68
      %s70 = sphi 0, %s68
      %s71 = sphi 0, %s70
      %s85 = sphi 0, %s71
      %s89 = sphi 0, %s89
      %s91 = sphi 0, %s89
      %s92 = sphi 0, %s91
      %s106 = sphi 0, %s92
      %s110 = sphi 0, %s110
      %s112 = sphi 0, %s110
      %s113 = sphi 0, %s112
      %s127 = sphi 0, %s113
      %s131 = sphi 0, %s131
      %s133 = sphi 0, %s131
      %s134 = sphi 0, %s133
      %s148 = sphi 0, %s134
      %s152 = sphi 0, %s152
      %s154 = sphi 0, %s152
      %s155 = sphi 0, %s154
      %s169 = sphi 0, %s155
      %s175 = sphi 0, %s177
      %s178 = sphi 0, %s175
      %s179 = sphi 0, %s178
      %s195 = sphi 0, %s179
    $region4: #{mlp_forward.1} parent=1 // loop_header_branch
      %16 = sbr.rel (%p14) target = $region8
    $region5: #{mlp_forward.1} parent=1 // loop_body
      %s18 = ssub.s32 %s13, 1
      %s19 = ssub.s32 %s13, 2
      %s20 = sadd.s32 %s13, 1
      %s21 = ssub.s32 %s13, %s20
      %p22 = scmp.eq.s32.totalorder %s21, 0
      %s24 = sadd.s32 %s23, 1
      %s25 = scalar_select %p22, %s23, %s24
      %p28 = pneg %p22
      %p29 = scmp.eq.s32.totalorder %s13, 1
      %p30 = por %p28, %p29
      %p31 = scmp.ne.s32.totalorder %s23, %s26
      %p32 = scmp.eq.s32.totalorder %s13, 0
      %p33 = por %p31, %p32
      %p34 = scmp.ne.s32.totalorder %s23, %s26
      %p35 = scmp.eq.s32.totalorder %s18, 1
      %p36 = por %p34, %p35
      %p37 = scmp.ne.s32.totalorder %s26, %s27
      %p38 = scmp.eq.s32.totalorder %s18, 0
      %p39 = por %p37, %p38
      %p40 = scmp.ne.s32.totalorder %s26, %s27
      %p41 = scmp.eq.s32.totalorder %s19, 1
      %p42 = por %p40, %p41
      %p44 = scmp.ne.s32.totalorder %s27, %s43
      %p45 = scmp.eq.s32.totalorder %s19, 0
      %p46 = por %p44, %p45
      %s48 = sadd.s32 %s47, 1
      %p51 = scmp.eq.s32.totalorder %s13, 1
      %p52 = scmp.ne.s32.totalorder %s47, %s49
      %p53 = scmp.eq.s32.totalorder %s13, 0
      %p54 = por %p52, %p53
      %p55 = scmp.ne.s32.totalorder %s47, %s49
      %p56 = scmp.eq.s32.totalorder %s18, 1
      %p57 = por %p55, %p56
      %p58 = scmp.ne.s32.totalorder %s49, %s50
      %p59 = scmp.eq.s32.totalorder %s18, 0
      %p60 = por %p58, %p59
      %p61 = scmp.ne.s32.totalorder %s49, %s50
      %p62 = scmp.eq.s32.totalorder %s19, 1
      %p63 = por %p61, %p62
      %p65 = scmp.ne.s32.totalorder %s50, %s64
      %p66 = scmp.eq.s32.totalorder %s19, 0
      %p67 = por %p65, %p66
      %s69 = sadd.s32 %s68, 1
      %p72 = scmp.eq.s32.totalorder %s13, 1
      %p73 = scmp.ne.s32.totalorder %s68, %s70
      %p74 = scmp.eq.s32.totalorder %s13, 0
      %p75 = por %p73, %p74
      %p76 = scmp.ne.s32.totalorder %s68, %s70
      %p77 = scmp.eq.s32.totalorder %s18, 1
      %p78 = por %p76, %p77
      %p79 = scmp.ne.s32.totalorder %s70, %s71
      %p80 = scmp.eq.s32.totalorder %s18, 0
      %p81 = por %p79, %p80
      %p82 = scmp.ne.s32.totalorder %s70, %s71
      %p83 = scmp.eq.s32.totalorder %s19, 1
      %p84 = por %p82, %p83
      %p86 = scmp.ne.s32.totalorder %s71, %s85
      %p87 = scmp.eq.s32.totalorder %s19, 0
      %p88 = por %p86, %p87
      %s90 = sadd.s32 %s89, 1
      %p93 = scmp.eq.s32.totalorder %s13, 1
      %p94 = scmp.ne.s32.totalorder %s89, %s91
      %p95 = scmp.eq.s32.totalorder %s13, 0
      %p96 = por %p94, %p95
      %p97 = scmp.ne.s32.totalorder %s89, %s91
      %p98 = scmp.eq.s32.totalorder %s18, 1
      %p99 = por %p97, %p98
      %p100 = scmp.ne.s32.totalorder %s91, %s92
      %p101 = scmp.eq.s32.totalorder %s18, 0
      %p102 = por %p100, %p101
      %p103 = scmp.ne.s32.totalorder %s91, %s92
      %p104 = scmp.eq.s32.totalorder %s19, 1
      %p105 = por %p103, %p104
      %p107 = scmp.ne.s32.totalorder %s92, %s106
      %p108 = scmp.eq.s32.totalorder %s19, 0
      %p109 = por %p107, %p108
      %s111 = sadd.s32 %s110, 1
      %p114 = scmp.eq.s32.totalorder %s13, 1
      %p115 = scmp.ne.s32.totalorder %s110, %s112
      %p116 = scmp.eq.s32.totalorder %s13, 0
      %p117 = por %p115, %p116
      %p118 = scmp.ne.s32.totalorder %s110, %s112
      %p119 = scmp.eq.s32.totalorder %s18, 1
      %p120 = por %p118, %p119
      %p121 = scmp.ne.s32.totalorder %s112, %s113
      %p122 = scmp.eq.s32.totalorder %s18, 0
      %p123 = por %p121, %p122
      %p124 = scmp.ne.s32.totalorder %s112, %s113
      %p125 = scmp.eq.s32.totalorder %s19, 1
      %p126 = por %p124, %p125
      %p128 = scmp.ne.s32.totalorder %s113, %s127
      %p129 = scmp.eq.s32.totalorder %s19, 0
      %p130 = por %p128, %p129
      %s132 = sadd.s32 %s131, 1
      %p135 = scmp.eq.s32.totalorder %s13, 1
      %p136 = scmp.ne.s32.totalorder %s131, %s133
      %p137 = scmp.eq.s32.totalorder %s13, 0
      %p138 = por %p136, %p137
      %p139 = scmp.ne.s32.totalorder %s131, %s133
      %p140 = scmp.eq.s32.totalorder %s18, 1
      %p141 = por %p139, %p140
      %p142 = scmp.ne.s32.totalorder %s133, %s134
      %p143 = scmp.eq.s32.totalorder %s18, 0
      %p144 = por %p142, %p143
      %p145 = scmp.ne.s32.totalorder %s133, %s134
      %p146 = scmp.eq.s32.totalorder %s19, 1
      %p147 = por %p145, %p146
      %p149 = scmp.ne.s32.totalorder %s134, %s148
      %p150 = scmp.eq.s32.totalorder %s19, 0
      %p151 = por %p149, %p150
      %s153 = sadd.s32 %s152, 1
      %p156 = scmp.eq.s32.totalorder %s13, 1
      %p157 = scmp.ne.s32.totalorder %s152, %s154
      %p158 = scmp.eq.s32.totalorder %s13, 0
      %p159 = por %p157, %p158
      %p160 = scmp.ne.s32.totalorder %s152, %s154
      %p161 = scmp.eq.s32.totalorder %s18, 1
      %p162 = por %p160, %p161
      %p163 = scmp.ne.s32.totalorder %s154, %s155
      %p164 = scmp.eq.s32.totalorder %s18, 0
      %p165 = por %p163, %p164
      %p166 = scmp.ne.s32.totalorder %s154, %s155
      %p167 = scmp.eq.s32.totalorder %s19, 1
      %p168 = por %p166, %p167
      %p170 = scmp.ne.s32.totalorder %s155, %s169
      %p171 = scmp.eq.s32.totalorder %s19, 0
      %p172 = por %p170, %p171
      %s173 = ssub.s32 %s13, %s20
      %p174 = scmp.eq.s32.totalorder %s173, 0
      %s176 = sadd.s32 %s175, 1
      %s177 = scalar_select %p174, %s175, %s176
      %p180 = pneg %p174
      %p181 = scmp.eq.s32.totalorder %s13, 1
      %p182 = por %p180, %p181
      %p183 = scmp.ne.s32.totalorder %s175, %s178
      %p184 = scmp.eq.s32.totalorder %s13, 0
      %p185 = por %p183, %p184
      %p186 = scmp.ne.s32.totalorder %s175, %s178
      %p187 = scmp.eq.s32.totalorder %s18, 1
      %p188 = por %p186, %p187
      %p189 = scmp.ne.s32.totalorder %s178, %s179
      %p190 = scmp.eq.s32.totalorder %s18, 0
      %p191 = por %p189, %p190
      %p192 = scmp.ne.s32.totalorder %s178, %s179
      %p193 = scmp.eq.s32.totalorder %s19, 1
      %p194 = por %p192, %p193
      %p196 = scmp.ne.s32.totalorder %s179, %s195
      %p197 = scmp.eq.s32.totalorder %s19, 0
      %p198 = por %p196, %p197
      %p199 = scmp.le.s32.totalorder 1, %s13
      %p200 = scmp.lt.s32.totalorder %s13, 3
      %p201 = pnand %p199, %p200
      %p202 = pneg %p201
      // Predicated region
      $region9: #{mlp_forward.1} parent=5 // pred_check
        _
      $region10: #{mlp_forward.1} parent=5 // pred_check_branch
        %204 = sbr.rel (%p201) target = $region12
      $region11: #{mlp_forward.1} parent=5 // pred_region
        %s205 = ssub.s32 %s13, 1
        // Predicated region
        $region13: #{mlp_forward.1} parent=11 // pred_check
          %p206 = pneg %p60
        $region14: #{mlp_forward.1} parent=11 // pred_check_branch
          %208 = sbr.rel (%p206) target = $region16
        $region15: #{mlp_forward.1} parent=11 // pred_region
          _
        $region16: #{mlp_forward.1} parent=11 // pred_fallthru
          _
        // Predicated region
        $region17: #{mlp_forward.1} parent=11 // pred_check
          %p209 = pneg %p81
        $region18: #{mlp_forward.1} parent=11 // pred_check_branch
          %211 = sbr.rel (%p209) target = $region20
        $region19: #{mlp_forward.1} parent=11 // pred_region
          _
        $region20: #{mlp_forward.1} parent=11 // pred_fallthru
          _
        // Predicated region
        $region21: #{mlp_forward.1} parent=11 // pred_check
          %p212 = pneg %p102
        $region22: #{mlp_forward.1} parent=11 // pred_check_branch
          %214 = sbr.rel (%p212) target = $region24
        $region23: #{mlp_forward.1} parent=11 // pred_region
          _
        $region24: #{mlp_forward.1} parent=11 // pred_fallthru
          _
        // Predicated region
        $region25: #{mlp_forward.1} parent=11 // pred_check
          %p215 = pneg %p123
        $region26: #{mlp_forward.1} parent=11 // pred_check_branch
          %217 = sbr.rel (%p215) target = $region28
        $region27: #{mlp_forward.1} parent=11 // pred_region
          _
        $region28: #{mlp_forward.1} parent=11 // pred_fallthru
          _
        // Predicated region
        $region29: #{mlp_forward.1} parent=11 // pred_check
          %p218 = pneg %p144
        $region30: #{mlp_forward.1} parent=11 // pred_check_branch
          %220 = sbr.rel (%p218) target = $region32
        $region31: #{mlp_forward.1} parent=11 // pred_region
          _
        $region32: #{mlp_forward.1} parent=11 // pred_fallthru
          _
        // Predicated region
        $region33: #{mlp_forward.1} parent=11 // pred_check
          %p221 = pneg %p165
        $region34: #{mlp_forward.1} parent=11 // pred_check_branch
          %223 = sbr.rel (%p221) target = $region36
        $region35: #{mlp_forward.1} parent=11 // pred_region
          _
        $region36: #{mlp_forward.1} parent=11 // pred_fallthru
          _
      $region12: #{mlp_forward.1} parent=5 // pred_fallthru
        _
      %p224 = scmp.lt.s32.totalorder %s13, 2
      // Predicated region
      $region37: #{mlp_forward.1} parent=5 // pred_check
        %p225 = pneg %p224
      $region38: #{mlp_forward.1} parent=5 // pred_check_branch
        %227 = sbr.rel (%p225) target = $region40
      $region39: #{mlp_forward.1} parent=5 // pred_region
        // Predicated region
        $region41: #{mlp_forward.1} parent=39 // pred_check
          %p228 = pneg %p33
        $region42: #{mlp_forward.1} parent=39 // pred_check_branch
          %230 = sbr.rel (%p228) target = $region44
        $region43: #{mlp_forward.1} parent=39 // pred_region
          %s231 = smul.u32 13, %s13
          %s232 = ssub.s32 25, %s231
          %p233 = scmp.lt.s32.totalorder %s232, 13
          %s234 = scalar_select %p233, %s232, 13
          %s235 = smul.u32 128, %s234
          %p236 = scmp.lt.s32.totalorder %s231, 24
          %s237 = scalar_select %p236, %s231, 24
          %s238 = smul.addr %s237, 8
          %s239 = scalar_lea.vmem %s0, %s238
          %s240 = smul.u32 13, %s13
          %s241 = ssub.s32 25, %s240
          %p242 = scmp.lt.s32.totalorder %s241, 13
          %s243 = scalar_select %p242, %s241, 13
          %s244 = smul.u32 128, %s243
        $region44: #{mlp_forward.1} parent=39 // pred_fallthru
          _
      $region40: #{mlp_forward.1} parent=5 // pred_fallthru
        _
      %p245 = scmp.le.s32.totalorder 1, %s13
      %p246 = scmp.lt.s32.totalorder %s13, 3
      %p247 = pnand %p245, %p246
      %p248 = pneg %p247
      // Predicated region
      $region45: #{mlp_forward.1} parent=5 // pred_check
        _
      $region46: #{mlp_forward.1} parent=5 // pred_check_branch
        %250 = sbr.rel (%p247) target = $region48
      $region47: #{mlp_forward.1} parent=5 // pred_region
        %s251 = ssub.s32 %s13, 1
        %s252 = smul.u32 13, %s18
        %s253 = ssub.s32 25, %s252
        %p254 = scmp.lt.s32.totalorder %s253, 13
        %s255 = scalar_select %p254, %s253, 13
        %s256 = smul.u32 128, %s255
        %p257 = scmp.lt.s32.totalorder %s252, 24
        %s258 = scalar_select %p257, %s252, 24
        %s259 = smul.addr %s258, 8
        %s260 = scalar_lea.vmem %s0, %s259
        %p261 = pneg %p39
        %p262 = pneg %p36
        %p263 = pneg %p60
        %p264 = pneg %p57
        %p265 = pneg %p81
        %p266 = pneg %p78
        %p267 = pneg %p102
        %p268 = pneg %p99
        %p269 = pneg %p123
        %p270 = pneg %p120
        %p271 = pneg %p144
        %p272 = pneg %p141
        %p273 = pneg %p165
        %p274 = pneg %p162
        %p275 = pneg %p191
        %p276 = pneg %p188
        %s277 = sand.u32 %s178, 1
        %s278 = sand.u32 %s178, 1
        %s279 = smul.addr %s278, 104
        %s280 = scalar_lea.vmem [#allocation2], %s279
        %s281 = smul.u32 13, %s18
        %s282 = ssub.s32 25, %s281
        %p283 = scmp.lt.s32.totalorder %s282, 13
        %s284 = scalar_select %p283, %s282, 13
        %s285 = smul.u32 128, %s284
        %p286 = scmp.lt.s32.totalorder %s281, 24
        %s287 = scalar_select %p286, %s281, 24
        %s288 = smul.addr %s287, 8
        %s289 = scalar_lea.vmem %s0, %s288
        %s290 = smul.u32 13, %s18
        %s291 = ssub.s32 25, %s290
        %p292 = scmp.lt.s32.totalorder %s291, 13
        %s293 = scalar_select %p292, %s291, 13
        %s294 = smul.u32 128, %s293
        %s295 = smul.u32 13, %s18
        %s296 = ssub.s32 25, %s295
        %p297 = scmp.lt.s32.totalorder %s296, 13
        %s298 = scalar_select %p297, %s296, 13
        %s299 = smul.u32 128, %s298
        %v301 = vld [vmem:[%s289] sm:$0xff]
        %v302 = vld [vmem:[%s289 + $0x8] sm:$0xff]
        %v303 = vld [vmem:[%s289 + $0x10] sm:$0xff]
        %v304 = vld [vmem:[%s289 + $0x18] sm:$0xff]
        %v305 = vld [vmem:[%s289 + $0x20] sm:$0xff]
        %v306 = vld [vmem:[%s289 + $0x28] sm:$0xff]
        %v307 = vld [vmem:[%s289 + $0x30] sm:$0xff]
        %v308 = vld [vmem:[%s289 + $0x38] sm:$0xff]
        %v309 = vld [vmem:[%s289 + $0x40] sm:$0xff]
        %v310 = vld [vmem:[%s289 + $0x48] sm:$0xff]
        %v311 = vld [vmem:[%s289 + $0x50] sm:$0xff]
        %v312 = vld [vmem:[%s289 + $0x58] sm:$0xff]
        %v313 = vld [vmem:[%s289 + $0x60] sm:$0xff]
        %v314 = vpack.c.bf16 %v302, %v301
        %v315 = vpack.c.bf16 %v304, %v303
        %v316 = vpack.c.bf16 %v306, %v305
        %v317 = vpack.c.bf16 %v308, %v307
        %v318 = vpack.c.bf16 %v310, %v309
        %v319 = vpack.c.bf16 %v312, %v311
        %v320 = vpack.c.bf16 %v313, %v313
        %v321 = vld [vmem:[%s1] sm:$0xf]
        %v322 = vld [vmem:[%s1 + $0x4] sm:$0xf]
        %v323 = vld [vmem:[%s1 + $0x8] sm:$0xf]
        %v324 = vld [vmem:[%s1 + $0xc] sm:$0xf]
        %v325 = vld [vmem:[%s2] sm:$0x1]
        %v327 = vlaneseq
        %v328 = vshrl.u32 %v327, 7
        %v329 = vsub.s32 0, %v328
        %v330 = vrot.slane %v325, %v329
        %v336 = vunpack.c.l.b16 %v321
        %v337 = vunpack.c.l.b16 %v322
        %v338 = vunpack.c.l.b16 %v323
        %v339 = vunpack.c.l.b16 %v324
        %v340 = vpack.c.b16 %v337, %v336
        %v341 = vpack.c.b16 %v339, %v338
        %vm344 = vcmask 261120
        %v346 = vsel %vm344, %v314, 0
        %v349 = vsel %vm344, %v315, 0
        %v352 = vsel %vm344, %v316, 0
        %v355 = vsel %vm344, %v317, 0
        %v358 = vsel %vm344, %v318, 0
        %v361 = vsel %vm344, %v319, 0
        %v364 = vsel %vm344, %v320, 0
        %366 = vmatprep.subr.bf16.mxu0 0
        %367 = vmatpush1.bf16.msra.mxu0 0
        %368 = vmatprep.subr.bf16.mxu0 0
        %369 = vmatpush1.bf16.msra.mxu0 0
        %370 = vmatprep.subr.bf16.mxu0 0
        %371 = vmatpush1.bf16.msra.mxu0 0
        %372 = vmatprep.subr.bf16.mxu0 0
        %373 = vmatpush1.bf16.msra.mxu0 0
        %374 = vmatprep.subr.bf16.mxu0 0
        %375 = vmatpush1.bf16.msra.mxu0 0
        %376 = vmatprep.subr.bf16.mxu0 0
        %377 = vmatpush1.bf16.msra.mxu0 0
        %378 = vmatprep.subr.bf16.mxu0 0
        %379 = vmatpush1.bf16.msra.mxu0 %v341
        %380 = vmatprep.subr.bf16.mxu0 0
        %381 = vmatpush1.bf16.msra.mxu0 %v340
        %382 = vmatprep.subr.bf16.mxu0 0
        %383 = vmatpush2.bf16.msra.mxu0 0
        %384 = vmatprep.subr.bf16.mxu0 0
        %385 = vmatpush2.bf16.msra.mxu0 0
        %386 = vmatprep.subr.bf16.mxu0 0
        %387 = vmatpush2.bf16.msra.mxu0 0
        %388 = vmatprep.subr.bf16.mxu0 0
        %389 = vmatpush2.bf16.msra.mxu0 0
        %390 = vmatprep.subr.bf16.mxu0 0
        %391 = vmatpush2.bf16.msra.mxu0 0
        %392 = vmatprep.subr.bf16.mxu0 0
        %393 = vmatpush2.bf16.msra.mxu0 0
        %394 = vmatprep.subr.bf16.mxu0 0
        %395 = vmatpush2.bf16.msra.mxu0 0
        %396 = vmatprep.subr.bf16.mxu0 0
        %397 = vmatpush2.bf16.msra.mxu0 0
        %398 = vmatprep.mubr.bf16.mxu0 0
        %399 = vmatmul.mubr.bf16.gmra.mxu0 %v346
        %v400 = vpop.f32.mrf.mxu0
        %v401 = vadd.f32 %v330, %v400
        %v402 = vpop.f32.mrf.mxu0
        %v403 = vpop.f32.mrf.mxu0
        %v404 = vadd.f32 %v330, %v403
        %v405 = vpop.f32.mrf.mxu0
        %406 = vmatprep.mubr.bf16.mxu0 0
        %407 = vmatmul.mubr.bf16.gmra.mxu0 %v349
        %v408 = vpop.f32.mrf.mxu0
        %v409 = vadd.f32 %v330, %v408
        %v410 = vpop.f32.mrf.mxu0
        %v411 = vpop.f32.mrf.mxu0
        %v412 = vadd.f32 %v330, %v411
        %v413 = vpop.f32.mrf.mxu0
        %414 = vmatprep.mubr.bf16.mxu0 0
        %415 = vmatmul.mubr.bf16.gmra.mxu0 %v352
        %v416 = vpop.f32.mrf.mxu0
        %v417 = vadd.f32 %v330, %v416
        %v418 = vpop.f32.mrf.mxu0
        %v419 = vpop.f32.mrf.mxu0
        %v420 = vadd.f32 %v330, %v419
        %v421 = vpop.f32.mrf.mxu0
        %422 = vmatprep.mubr.bf16.mxu0 0
        %423 = vmatmul.mubr.bf16.gmra.mxu0 %v355
        %v424 = vpop.f32.mrf.mxu0
        %v425 = vadd.f32 %v330, %v424
        %v426 = vpop.f32.mrf.mxu0
        %v427 = vpop.f32.mrf.mxu0
        %v428 = vadd.f32 %v330, %v427
        %v429 = vpop.f32.mrf.mxu0
        %430 = vmatprep.mubr.bf16.mxu0 0
        %431 = vmatmul.mubr.bf16.gmra.mxu0 %v358
        %v432 = vpop.f32.mrf.mxu0
        %v433 = vadd.f32 %v330, %v432
        %v434 = vpop.f32.mrf.mxu0
        %v435 = vpop.f32.mrf.mxu0
        %v436 = vadd.f32 %v330, %v435
        %v437 = vpop.f32.mrf.mxu0
        %438 = vmatprep.mubr.bf16.mxu0 0
        %439 = vmatmul.mubr.bf16.gmra.mxu0 %v361
        %v440 = vpop.f32.mrf.mxu0
        %v441 = vadd.f32 %v330, %v440
        %v442 = vpop.f32.mrf.mxu0
        %v443 = vpop.f32.mrf.mxu0
        %v444 = vadd.f32 %v330, %v443
        %v445 = vpop.f32.mrf.mxu0
        %446 = vmatprep.mubr.bf16.mxu0 0
        %447 = vmatmul.mubr.bf16.gmra.mxu0 %v364
        %v448 = vpop.f32.mrf.mxu0
        %v449 = vadd.f32 %v330, %v448
        %v450 = vpop.f32.mrf.mxu0
        %v451 = vpop.f32.mrf.mxu0
        %v452 = vpop.f32.mrf.mxu0
        %453 = vdwg.mxu0
        %v454 = vmax.f32 %v401, 0.0
        %v455 = vmax.f32 %v404, 0.0
        %v456 = vmax.f32 %v409, 0.0
        %v457 = vmax.f32 %v412, 0.0
        %v458 = vmax.f32 %v417, 0.0
        %v459 = vmax.f32 %v420, 0.0
        %v460 = vmax.f32 %v425, 0.0
        %v461 = vmax.f32 %v428, 0.0
        %v462 = vmax.f32 %v433, 0.0
        %v463 = vmax.f32 %v436, 0.0
        %v464 = vmax.f32 %v441, 0.0
        %v465 = vmax.f32 %v444, 0.0
        %v466 = vmax.f32 %v449, 0.0
        %v467 = vpack.c.bf16 %v455, %v454
        %v468 = vpack.c.bf16 %v457, %v456
        %v469 = vpack.c.bf16 %v459, %v458
        %v470 = vpack.c.bf16 %v461, %v460
        %v471 = vpack.c.bf16 %v463, %v462
        %v472 = vpack.c.bf16 %v465, %v464
        %v473 = vpack.c.bf16 %v466, %v466
        %v474 = vld [vmem:[%s3] sm:$0xf]
        %v475 = vld [vmem:[%s3 + $0x4] sm:$0xf]
        %v476 = vld [vmem:[%s3 + $0x8] sm:$0xf]
        %v477 = vld [vmem:[%s3 + $0xc] sm:$0xf]
        %v478 = vld [vmem:[%s3 + $0x10] sm:$0xf]
        %v479 = vld [vmem:[%s3 + $0x14] sm:$0xf]
        %v480 = vld [vmem:[%s3 + $0x18] sm:$0xf]
        %v481 = vld [vmem:[%s3 + $0x1c] sm:$0xf]
        %v482 = vld [vmem:[%s4] sm:$0x1]
        %v484 = vlaneseq
        %v485 = vshrl.u32 %v484, 7
        %v486 = vsub.s32 0, %v485
        %v487 = vrot.slane %v482, %v486
        %v497 = vunpack.c.l.b16 %v474
        %v498 = vunpack.c.l.b16 %v475
        %v499 = vunpack.c.l.b16 %v476
        %v500 = vunpack.c.l.b16 %v477
        %v501 = vunpack.c.l.b16 %v478
        %v502 = vunpack.c.l.b16 %v479
        %v503 = vunpack.c.l.b16 %v480
        %v504 = vunpack.c.l.b16 %v481
        %v505 = vpack.c.b16 %v498, %v497
        %v506 = vpack.c.b16 %v500, %v499
        %v507 = vpack.c.b16 %v502, %v501
        %v508 = vpack.c.b16 %v504, %v503
        %vm513 = vcmask 523264
        %v515 = vsel %vm513, %v467, 0
        %v518 = vsel %vm513, %v468, 0
        %v521 = vsel %vm513, %v469, 0
        %v524 = vsel %vm513, %v470, 0
        %v527 = vsel %vm513, %v471, 0
        %v530 = vsel %vm513, %v472, 0
        %v533 = vsel %vm513, %v473, 0
        %535 = vmatprep.subr.bf16.mxu0 0
        %536 = vmatpush1.bf16.msra.mxu0 0
        %537 = vmatprep.subr.bf16.mxu0 0
        %538 = vmatpush1.bf16.msra.mxu0 0
        %539 = vmatprep.subr.bf16.mxu0 0
        %540 = vmatpush1.bf16.msra.mxu0 0
        %541 = vmatprep.subr.bf16.mxu0 0
        %542 = vmatpush1.bf16.msra.mxu0 0
        %543 = vmatprep.subr.bf16.mxu0 0
        %544 = vmatpush1.bf16.msra.mxu0 %v508
        %545 = vmatprep.subr.bf16.mxu0 0
        %546 = vmatpush1.bf16.msra.mxu0 %v507
        %547 = vmatprep.subr.bf16.mxu0 0
        %548 = vmatpush1.bf16.msra.mxu0 %v506
        %549 = vmatprep.subr.bf16.mxu0 0
        %550 = vmatpush1.bf16.msra.mxu0 %v505
        %551 = vmatprep.subr.bf16.mxu0 0
        %552 = vmatpush2.bf16.msra.mxu0 0
        %553 = vmatprep.subr.bf16.mxu0 0
        %554 = vmatpush2.bf16.msra.mxu0 0
        %555 = vmatprep.subr.bf16.mxu0 0
        %556 = vmatpush2.bf16.msra.mxu0 0
        %557 = vmatprep.subr.bf16.mxu0 0
        %558 = vmatpush2.bf16.msra.mxu0 0
        %559 = vmatprep.subr.bf16.mxu0 0
        %560 = vmatpush2.bf16.msra.mxu0 0
        %561 = vmatprep.subr.bf16.mxu0 0
        %562 = vmatpush2.bf16.msra.mxu0 0
        %563 = vmatprep.subr.bf16.mxu0 0
        %564 = vmatpush2.bf16.msra.mxu0 0
        %565 = vmatprep.subr.bf16.mxu0 0
        %566 = vmatpush2.bf16.msra.mxu0 0
        %567 = vmatprep.mubr.bf16.mxu0 0
        %568 = vmatmul.mubr.bf16.gmra.mxu0 %v515
        %v569 = vpop.f32.mrf.mxu0
        %v570 = vadd.f32 %v487, %v569
        %v571 = vpop.f32.mrf.mxu0
        %v572 = vpop.f32.mrf.mxu0
        %v573 = vadd.f32 %v487, %v572
        %v574 = vpop.f32.mrf.mxu0
        %575 = vmatprep.mubr.bf16.mxu0 0
        %576 = vmatmul.mubr.bf16.gmra.mxu0 %v518
        %v577 = vpop.f32.mrf.mxu0
        %v578 = vadd.f32 %v487, %v577
        %v579 = vpop.f32.mrf.mxu0
        %v580 = vpop.f32.mrf.mxu0
        %v581 = vadd.f32 %v487, %v580
        %v582 = vpop.f32.mrf.mxu0
        %583 = vmatprep.mubr.bf16.mxu0 0
        %584 = vmatmul.mubr.bf16.gmra.mxu0 %v521
        %v585 = vpop.f32.mrf.mxu0
        %v586 = vadd.f32 %v487, %v585
        %v587 = vpop.f32.mrf.mxu0
        %v588 = vpop.f32.mrf.mxu0
        %v589 = vadd.f32 %v487, %v588
        %v590 = vpop.f32.mrf.mxu0
        %591 = vmatprep.mubr.bf16.mxu0 0
        %592 = vmatmul.mubr.bf16.gmra.mxu0 %v524
        %v593 = vpop.f32.mrf.mxu0
        %v594 = vadd.f32 %v487, %v593
        %v595 = vpop.f32.mrf.mxu0
        %v596 = vpop.f32.mrf.mxu0
        %v597 = vadd.f32 %v487, %v596
        %v598 = vpop.f32.mrf.mxu0
        %599 = vmatprep.mubr.bf16.mxu0 0
        %600 = vmatmul.mubr.bf16.gmra.mxu0 %v527
        %v601 = vpop.f32.mrf.mxu0
        %v602 = vadd.f32 %v487, %v601
        %v603 = vpop.f32.mrf.mxu0
        %v604 = vpop.f32.mrf.mxu0
        %v605 = vadd.f32 %v487, %v604
        %v606 = vpop.f32.mrf.mxu0
        %607 = vmatprep.mubr.bf16.mxu0 0
        %608 = vmatmul.mubr.bf16.gmra.mxu0 %v530
        %v609 = vpop.f32.mrf.mxu0
        %v610 = vadd.f32 %v487, %v609
        %v611 = vpop.f32.mrf.mxu0
        %v612 = vpop.f32.mrf.mxu0
        %v613 = vadd.f32 %v487, %v612
        %v614 = vpop.f32.mrf.mxu0
        %615 = vmatprep.mubr.bf16.mxu0 0
        %616 = vmatmul.mubr.bf16.gmra.mxu0 %v533
        %v617 = vpop.f32.mrf.mxu0
        %v618 = vadd.f32 %v487, %v617
        %v619 = vpop.f32.mrf.mxu0
        %v620 = vpop.f32.mrf.mxu0
        %v621 = vpop.f32.mrf.mxu0
        %622 = vdwg.mxu0
        %v623 = vmax.f32 %v570, 0.0
        %v624 = vmax.f32 %v573, 0.0
        %v625 = vmax.f32 %v578, 0.0
        %v626 = vmax.f32 %v581, 0.0
        %v627 = vmax.f32 %v586, 0.0
        %v628 = vmax.f32 %v589, 0.0
        %v629 = vmax.f32 %v594, 0.0
        %v630 = vmax.f32 %v597, 0.0
        %v631 = vmax.f32 %v602, 0.0
        %v632 = vmax.f32 %v605, 0.0
        %v633 = vmax.f32 %v610, 0.0
        %v634 = vmax.f32 %v613, 0.0
        %v635 = vmax.f32 %v618, 0.0
        %v636 = vpack.c.bf16 %v624, %v623
        %v637 = vpack.c.bf16 %v626, %v625
        %v638 = vpack.c.bf16 %v628, %v627
        %v639 = vpack.c.bf16 %v630, %v629
        %v640 = vpack.c.bf16 %v632, %v631
        %v641 = vpack.c.bf16 %v634, %v633
        %v642 = vpack.c.bf16 %v635, %v635
        %v643 = vld [vmem:[%s5] sm:$0xf]
        %v644 = vld [vmem:[%s5 + $0x4] sm:$0xf]
        %v645 = vld [vmem:[%s5 + $0x8] sm:$0xf]
        %v646 = vld [vmem:[%s5 + $0xc] sm:$0xf]
        %v647 = vld [vmem:[%s5 + $0x10] sm:$0xf]
        %v648 = vld [vmem:[%s5 + $0x14] sm:$0xf]
        %v649 = vld [vmem:[%s5 + $0x18] sm:$0xf]
        %v650 = vld [vmem:[%s5 + $0x1c] sm:$0xf]
        %v651 = vld [vmem:[%s6] sm:$0x1]
        %v653 = vlaneseq
        %v654 = vshrl.u32 %v653, 7
        %v655 = vsub.s32 0, %v654
        %v656 = vrot.slane %v651, %v655
        %v666 = vunpack.c.l.b16 %v643
        %v667 = vunpack.c.l.b16 %v644
        %v668 = vunpack.c.l.b16 %v645
        %v669 = vunpack.c.l.b16 %v646
        %v670 = vunpack.c.l.b16 %v647
        %v671 = vunpack.c.l.b16 %v648
        %v672 = vunpack.c.l.b16 %v649
        %v673 = vunpack.c.l.b16 %v650
        %v674 = vpack.c.b16 %v667, %v666
        %v675 = vpack.c.b16 %v669, %v668
        %v676 = vpack.c.b16 %v671, %v670
        %v677 = vpack.c.b16 %v673, %v672
        %v683 = vsel %vm513, %v636, 0
        %v686 = vsel %vm513, %v637, 0
        %v689 = vsel %vm513, %v638, 0
        %v692 = vsel %vm513, %v639, 0
        %v695 = vsel %vm513, %v640, 0
        %v698 = vsel %vm513, %v641, 0
        %v701 = vsel %vm513, %v642, 0
        %703 = vmatprep.subr.bf16.mxu0 0
        %704 = vmatpush1.bf16.msra.mxu0 0
        %705 = vmatprep.subr.bf16.mxu0 0
        %706 = vmatpush1.bf16.msra.mxu0 0
        %707 = vmatprep.subr.bf16.mxu0 0
        %708 = vmatpush1.bf16.msra.mxu0 0
        %709 = vmatprep.subr.bf16.mxu0 0
        %710 = vmatpush1.bf16.msra.mxu0 0
        %711 = vmatprep.subr.bf16.mxu0 0
        %712 = vmatpush1.bf16.msra.mxu0 %v677
        %713 = vmatprep.subr.bf16.mxu0 0
        %714 = vmatpush1.bf16.msra.mxu0 %v676
        %715 = vmatprep.subr.bf16.mxu0 0
        %716 = vmatpush1.bf16.msra.mxu0 %v675
        %717 = vmatprep.subr.bf16.mxu0 0
        %718 = vmatpush1.bf16.msra.mxu0 %v674
        %719 = vmatprep.subr.bf16.mxu0 0
        %720 = vmatpush2.bf16.msra.mxu0 0
        %721 = vmatprep.subr.bf16.mxu0 0
        %722 = vmatpush2.bf16.msra.mxu0 0
        %723 = vmatprep.subr.bf16.mxu0 0
        %724 = vmatpush2.bf16.msra.mxu0 0
        %725 = vmatprep.subr.bf16.mxu0 0
        %726 = vmatpush2.bf16.msra.mxu0 0
        %727 = vmatprep.subr.bf16.mxu0 0
        %728 = vmatpush2.bf16.msra.mxu0 0
        %729 = vmatprep.subr.bf16.mxu0 0
        %730 = vmatpush2.bf16.msra.mxu0 0
        %731 = vmatprep.subr.bf16.mxu0 0
        %732 = vmatpush2.bf16.msra.mxu0 0
        %733 = vmatprep.subr.bf16.mxu0 0
        %734 = vmatpush2.bf16.msra.mxu0 0
        %735 = vmatprep.mubr.bf16.mxu0 0
        %736 = vmatmul.mubr.bf16.gmra.mxu0 %v683
        %v737 = vpop.f32.mrf.mxu0
        %v738 = vadd.f32 %v656, %v737
        %v739 = vpop.f32.mrf.mxu0
        %v740 = vpop.f32.mrf.mxu0
        %v741 = vadd.f32 %v656, %v740
        %v742 = vpop.f32.mrf.mxu0
        %743 = vmatprep.mubr.bf16.mxu0 0
        %744 = vmatmul.mubr.bf16.gmra.mxu0 %v686
        %v745 = vpop.f32.mrf.mxu0
        %v746 = vadd.f32 %v656, %v745
        %v747 = vpop.f32.mrf.mxu0
        %v748 = vpop.f32.mrf.mxu0
        %v749 = vadd.f32 %v656, %v748
        %v750 = vpop.f32.mrf.mxu0
        %751 = vmatprep.mubr.bf16.mxu0 0
        %752 = vmatmul.mubr.bf16.gmra.mxu0 %v689
        %v753 = vpop.f32.mrf.mxu0
        %v754 = vadd.f32 %v656, %v753
        %v755 = vpop.f32.mrf.mxu0
        %v756 = vpop.f32.mrf.mxu0
        %v757 = vadd.f32 %v656, %v756
        %v758 = vpop.f32.mrf.mxu0
        %759 = vmatprep.mubr.bf16.mxu0 0
        %760 = vmatmul.mubr.bf16.gmra.mxu0 %v692
        %v761 = vpop.f32.mrf.mxu0
        %v762 = vadd.f32 %v656, %v761
        %v763 = vpop.f32.mrf.mxu0
        %v764 = vpop.f32.mrf.mxu0
        %v765 = vadd.f32 %v656, %v764
        %v766 = vpop.f32.mrf.mxu0
        %767 = vmatprep.mubr.bf16.mxu0 0
        %768 = vmatmul.mubr.bf16.gmra.mxu0 %v695
        %v769 = vpop.f32.mrf.mxu0
        %v770 = vadd.f32 %v656, %v769
        %v771 = vpop.f32.mrf.mxu0
        %v772 = vpop.f32.mrf.mxu0
        %v773 = vadd.f32 %v656, %v772
        %v774 = vpop.f32.mrf.mxu0
        %775 = vmatprep.mubr.bf16.mxu0 0
        %776 = vmatmul.mubr.bf16.gmra.mxu0 %v698
        %v777 = vpop.f32.mrf.mxu0
        %v778 = vadd.f32 %v656, %v777
        %v779 = vpop.f32.mrf.mxu0
        %v780 = vpop.f32.mrf.mxu0
        %v781 = vadd.f32 %v656, %v780
        %v782 = vpop.f32.mrf.mxu0
        %783 = vmatprep.mubr.bf16.mxu0 0
        %784 = vmatmul.mubr.bf16.gmra.mxu0 %v701
        %v785 = vpop.f32.mrf.mxu0
        %v786 = vadd.f32 %v656, %v785
        %v787 = vpop.f32.mrf.mxu0
        %v788 = vpop.f32.mrf.mxu0
        %v789 = vpop.f32.mrf.mxu0
        %790 = vdwg.mxu0
        %vm791 = vcmask 130048
        %792 = vst.msk [vmem:[%s280] sm:$0xff] %vm791, %v738
        %793 = vst.msk [vmem:[%s280 + $0x8] sm:$0xff] %vm791, %v741
        %794 = vst.msk [vmem:[%s280 + $0x10] sm:$0xff] %vm791, %v746
        %795 = vst.msk [vmem:[%s280 + $0x18] sm:$0xff] %vm791, %v749
        %796 = vst.msk [vmem:[%s280 + $0x20] sm:$0xff] %vm791, %v754
        %797 = vst.msk [vmem:[%s280 + $0x28] sm:$0xff] %vm791, %v757
        %798 = vst.msk [vmem:[%s280 + $0x30] sm:$0xff] %vm791, %v762
        %799 = vst.msk [vmem:[%s280 + $0x38] sm:$0xff] %vm791, %v765
        %800 = vst.msk [vmem:[%s280 + $0x40] sm:$0xff] %vm791, %v770
        %801 = vst.msk [vmem:[%s280 + $0x48] sm:$0xff] %vm791, %v773
        %802 = vst.msk [vmem:[%s280 + $0x50] sm:$0xff] %vm791, %v778
        %803 = vst.msk [vmem:[%s280 + $0x58] sm:$0xff] %vm791, %v781
        %804 = vst.msk [vmem:[%s280 + $0x60] sm:$0xff] %vm791, %v786
        %s805 = sand.u32 %s178, 1
        %s806 = sand.u32 %s178, 1
        %s807 = smul.addr %s806, 104
        %s808 = scalar_lea.vmem [#allocation2], %s807
        // Predicated region
        $region49: #{mlp_forward.1} parent=47 // pred_check
          %p809 = pneg %p188
        $region50: #{mlp_forward.1} parent=47 // pred_check_branch
          %811 = sbr.rel (%p809) target = $region52
        $region51: #{mlp_forward.1} parent=47 // pred_region
          %s812 = smul.u32 13, %s18
          %s813 = ssub.s32 25, %s812
          %p814 = scmp.lt.s32.totalorder %s813, 13
          %s815 = scalar_select %p814, %s813, 13
          %s816 = smul.u32 128, %s815
          %p817 = scmp.ne.s32.totalorder 0, %s816
          %s818 = smul.addr %s812, 8
          %s819 = scalar_lea.vmem %s7, %s818
          // Predicated region
          $region53: #{mlp_forward.1} parent=51 // pred_check
            %p820 = pneg %p817
          $region54: #{mlp_forward.1} parent=51 // pred_check_branch
            %822 = sbr.rel (%p820) target = $region56
          $region55: #{mlp_forward.1} parent=51 // pred_region
            // Predicated region
            $region57: #{mlp_forward.1} parent=55 // pred_check
              _
            $region58: #{mlp_forward.1} parent=55 // pred_check_branch
              %824 = sbr.rel (0) target = $region60
            $region59: #{mlp_forward.1} parent=55 // pred_region
              // Predicated region
              $region79: #{mlp_forward.1} parent=59 // pred_check
                _
              $region80: #{mlp_forward.1} parent=59 // pred_check_branch
                %899 = sbr.rel (0) target = $region82
              $region81: #{mlp_forward.1} parent=59 // pred_region
                %s900 = sdiv.u32.pop %s815, 13
                %s901 = srem.u32.pop %s815, 13
                // While loop
                $region83: #{mlp_forward.1} parent=81 // loop_pre_header
                  _
                $region84: #{mlp_forward.1} parent=81 // loop_header
                  %s903 = sphi 0, %s905
                  %p904 = scmp.ge.s32.totalorder %s903, %s900
                  %s908 = sphi 0, %s939
                  %s909 = sphi %s808, %s942
                  %s910 = sphi %s819, %s943
                $region85: #{mlp_forward.1} parent=81 // loop_header_branch
                  %907 = sbr.rel (%p904) target = $region89
                $region86: #{mlp_forward.1} parent=81 // loop_body
                  %v911 = vld [vmem:[%s909] sm:$0xff]
                  %912 = vst [vmem:[%s910] sm:$0xff] %v911
                  %v913 = vld [vmem:[%s909 + $0x8] sm:$0xff]
                  %914 = vst [vmem:[%s910 + $0x8] sm:$0xff] %v913
                  %v915 = vld [vmem:[%s909 + $0x10] sm:$0xff]
                  %916 = vst [vmem:[%s910 + $0x10] sm:$0xff] %v915
                  %v917 = vld [vmem:[%s909 + $0x18] sm:$0xff]
                  %918 = vst [vmem:[%s910 + $0x18] sm:$0xff] %v917
                  %v919 = vld [vmem:[%s909 + $0x20] sm:$0xff]
                  %920 = vst [vmem:[%s910 + $0x20] sm:$0xff] %v919
                  %v921 = vld [vmem:[%s909 + $0x28] sm:$0xff]
                  %922 = vst [vmem:[%s910 + $0x28] sm:$0xff] %v921
                  %v923 = vld [vmem:[%s909 + $0x30] sm:$0xff]
                  %924 = vst [vmem:[%s910 + $0x30] sm:$0xff] %v923
                  %v925 = vld [vmem:[%s909 + $0x38] sm:$0xff]
                  %926 = vst [vmem:[%s910 + $0x38] sm:$0xff] %v925
                  %v927 = vld [vmem:[%s909 + $0x40] sm:$0xff]
                  %928 = vst [vmem:[%s910 + $0x40] sm:$0xff] %v927
                  %v929 = vld [vmem:[%s909 + $0x48] sm:$0xff]
                  %930 = vst [vmem:[%s910 + $0x48] sm:$0xff] %v929
                  %v931 = vld [vmem:[%s909 + $0x50] sm:$0xff]
                  %932 = vst [vmem:[%s910 + $0x50] sm:$0xff] %v931
                  %v933 = vld [vmem:[%s909 + $0x58] sm:$0xff]
                  %934 = vst [vmem:[%s910 + $0x58] sm:$0xff] %v933
                  %v935 = vld [vmem:[%s909 + $0x60] sm:$0xff]
                  %936 = vst [vmem:[%s910 + $0x60] sm:$0xff] %v935
                  %s937 = sadd.s32 1, %s908
                  %p938 = scmp.ge.s32.totalorder %s937, %s900
                  %s939 = scalar_select %p938, 0, %s937
                  %s940 = smul.u32 %s939, 104
                  %s941 = smul.u32 %s939, 104
                  %s942 = scalar_lea.vmem %s808, %s940 [#allocation2]
                  %s943 = scalar_lea.vmem %s819, %s941
                $region87: #{mlp_forward.1} parent=81 // loop_footer
                  %s905 = sadd.s32 %s903, 1
                $region88: #{mlp_forward.1} parent=81 // loop_footer_branch
                  %902 = sbr.rel target = $region84
                $region89: #{mlp_forward.1} parent=81 // loop_exit
                  _
                %s944 = sdiv.u32.pop %s815, 13
                %s945 = srem.u32.pop %s815, 13
                %s946 = smul.u32 %s944, 13
                %s947 = smul.u32 8, %s946
                %s948 = scalar_lea.vmem %s808, %s947 [#allocation2]
                %s949 = smul.u32 8, %s946
                %s950 = scalar_lea.vmem %s819, %s949
                // While loop
                $region90: #{mlp_forward.1} parent=81 // loop_pre_header
                  _
                $region91: #{mlp_forward.1} parent=81 // loop_header
                  %s952 = sphi 0, %s954
                  %p953 = scmp.ge.s32.totalorder %s952, %s945
                  %s957 = sphi 0, %s964
                  %s958 = sphi %s948, %s967
                  %s959 = sphi %s950, %s968
                $region92: #{mlp_forward.1} parent=81 // loop_header_branch
                  %956 = sbr.rel (%p953) target = $region96
                $region93: #{mlp_forward.1} parent=81 // loop_body
                  %v960 = vld [vmem:[%s958] sm:$0xff]
                  %961 = vst [vmem:[%s959] sm:$0xff] %v960
                  %s962 = sadd.s32 1, %s957
                  %p963 = scmp.ge.s32.totalorder %s962, %s945
                  %s964 = scalar_select %p963, 0, %s962
                  %s965 = smul.u32 %s964, 8
                  %s966 = smul.u32 %s964, 8
                  %s967 = scalar_lea.vmem %s948, %s965 [#allocation2]
                  %s968 = scalar_lea.vmem %s950, %s966
                $region94: #{mlp_forward.1} parent=81 // loop_footer
                  %s954 = sadd.s32 %s952, 1
                $region95: #{mlp_forward.1} parent=81 // loop_footer_branch
                  %951 = sbr.rel target = $region91
                $region96: #{mlp_forward.1} parent=81 // loop_exit
                  _
              $region82: #{mlp_forward.1} parent=59 // pred_fallthru
                _
              // Predicated region
              $region97: #{mlp_forward.1} parent=59 // pred_check
                _
              $region98: #{mlp_forward.1} parent=59 // pred_check_branch
                %970 = sbr.rel target = $region100
              $region99: #{mlp_forward.1} parent=59 // pred_region
                _
              $region100: #{mlp_forward.1} parent=59 // pred_fallthru
                _
            $region60: #{mlp_forward.1} parent=55 // pred_fallthru
              _
            // Predicated region
            $region61: #{mlp_forward.1} parent=55 // pred_check
              _
            $region62: #{mlp_forward.1} parent=55 // pred_check_branch
              %826 = sbr.rel target = $region64
            $region63: #{mlp_forward.1} parent=55 // pred_region
              %s828 = ssub.s32 256, 1
              %s829 = sdiv.u32.pop %s815, 13
              %s830 = srem.u32.pop %s815, 13
              // While loop
              $region65: #{mlp_forward.1} parent=63 // loop_pre_header
                _
              $region66: #{mlp_forward.1} parent=63 // loop_header
                %s832 = sphi 0, %s834
                %p833 = scmp.ge.s32.totalorder %s832, %s829
                %s837 = sphi 0, %s868
                %s838 = sphi %s808, %s871
                %s839 = sphi %s819, %s872
              $region67: #{mlp_forward.1} parent=63 // loop_header_branch
                %836 = sbr.rel (%p833) target = $region71
              $region68: #{mlp_forward.1} parent=63 // loop_body
                %v840 = vld [vmem:[%s838] sm:%s828]
                %841 = vst [vmem:[%s839] sm:%s828] %v840
                %v842 = vld [vmem:[%s838 + $0x8] sm:%s828]
                %843 = vst [vmem:[%s839 + $0x8] sm:%s828] %v842
                %v844 = vld [vmem:[%s838 + $0x10] sm:%s828]
                %845 = vst [vmem:[%s839 + $0x10] sm:%s828] %v844
                %v846 = vld [vmem:[%s838 + $0x18] sm:%s828]
                %847 = vst [vmem:[%s839 + $0x18] sm:%s828] %v846
                %v848 = vld [vmem:[%s838 + $0x20] sm:%s828]
                %849 = vst [vmem:[%s839 + $0x20] sm:%s828] %v848
                %v850 = vld [vmem:[%s838 + $0x28] sm:%s828]
                %851 = vst [vmem:[%s839 + $0x28] sm:%s828] %v850
                %v852 = vld [vmem:[%s838 + $0x30] sm:%s828]
                %853 = vst [vmem:[%s839 + $0x30] sm:%s828] %v852
                %v854 = vld [vmem:[%s838 + $0x38] sm:%s828]
                %855 = vst [vmem:[%s839 + $0x38] sm:%s828] %v854
                %v856 = vld [vmem:[%s838 + $0x40] sm:%s828]
                %857 = vst [vmem:[%s839 + $0x40] sm:%s828] %v856
                %v858 = vld [vmem:[%s838 + $0x48] sm:%s828]
                %859 = vst [vmem:[%s839 + $0x48] sm:%s828] %v858
                %v860 = vld [vmem:[%s838 + $0x50] sm:%s828]
                %861 = vst [vmem:[%s839 + $0x50] sm:%s828] %v860
                %v862 = vld [vmem:[%s838 + $0x58] sm:%s828]
                %863 = vst [vmem:[%s839 + $0x58] sm:%s828] %v862
                %v864 = vld [vmem:[%s838 + $0x60] sm:%s828]
                %865 = vst [vmem:[%s839 + $0x60] sm:%s828] %v864
                %s866 = sadd.s32 1, %s837
                %p867 = scmp.ge.s32.totalorder %s866, %s829
                %s868 = scalar_select %p867, 0, %s866
                %s869 = smul.u32 %s868, 104
                %s870 = smul.u32 %s868, 104
                %s871 = scalar_lea.vmem %s808, %s869 [#allocation2]
                %s872 = scalar_lea.vmem %s819, %s870
              $region69: #{mlp_forward.1} parent=63 // loop_footer
                %s834 = sadd.s32 %s832, 1
              $region70: #{mlp_forward.1} parent=63 // loop_footer_branch
                %831 = sbr.rel target = $region66
              $region71: #{mlp_forward.1} parent=63 // loop_exit
                _
              %s873 = sdiv.u32.pop %s815, 13
              %s874 = srem.u32.pop %s815, 13
              %s875 = smul.u32 %s873, 13
              %s876 = smul.u32 8, %s875
              %s877 = scalar_lea.vmem %s808, %s876 [#allocation2]
              %s878 = smul.u32 8, %s875
              %s879 = scalar_lea.vmem %s819, %s878
              // While loop
              $region72: #{mlp_forward.1} parent=63 // loop_pre_header
                _
              $region73: #{mlp_forward.1} parent=63 // loop_header
                %s881 = sphi 0, %s883
                %p882 = scmp.ge.s32.totalorder %s881, %s874
                %s886 = sphi 0, %s893
                %s887 = sphi %s877, %s896
                %s888 = sphi %s879, %s897
              $region74: #{mlp_forward.1} parent=63 // loop_header_branch
                %885 = sbr.rel (%p882) target = $region78
              $region75: #{mlp_forward.1} parent=63 // loop_body
                %v889 = vld [vmem:[%s887] sm:%s828]
                %890 = vst [vmem:[%s888] sm:%s828] %v889
                %s891 = sadd.s32 1, %s886
                %p892 = scmp.ge.s32.totalorder %s891, %s874
                %s893 = scalar_select %p892, 0, %s891
                %s894 = smul.u32 %s893, 8
                %s895 = smul.u32 %s893, 8
                %s896 = scalar_lea.vmem %s877, %s894 [#allocation2]
                %s897 = scalar_lea.vmem %s879, %s895
              $region76: #{mlp_forward.1} parent=63 // loop_footer
                %s883 = sadd.s32 %s881, 1
              $region77: #{mlp_forward.1} parent=63 // loop_footer_branch
                %880 = sbr.rel target = $region73
              $region78: #{mlp_forward.1} parent=63 // loop_exit
                _
            $region64: #{mlp_forward.1} parent=55 // pred_fallthru
              _
          $region56: #{mlp_forward.1} parent=51 // pred_fallthru
            _
          %971 = vnop
        $region52: #{mlp_forward.1} parent=47 // pred_fallthru
          _
      $region48: #{mlp_forward.1} parent=5 // pred_fallthru
        _
      %p972 = scmp.le.s32.totalorder 2, %s13
      // Predicated region
      $region101: #{mlp_forward.1} parent=5 // pred_check
        %p973 = pneg %p972
      $region102: #{mlp_forward.1} parent=5 // pred_check_branch
        %975 = sbr.rel (%p973) target = $region104
      $region103: #{mlp_forward.1} parent=5 // pred_region
        %s976 = ssub.s32 %s13, 2
        // Predicated region
        $region105: #{mlp_forward.1} parent=103 // pred_check
          %p977 = pneg %p194
        $region106: #{mlp_forward.1} parent=103 // pred_check_branch
          %979 = sbr.rel (%p977) target = $region108
        $region107: #{mlp_forward.1} parent=103 // pred_region
          %s980 = sand.u32 %s179, 1
          %s981 = sand.u32 %s179, 1
          %s982 = smul.addr %s981, 104
          %s983 = scalar_lea.vmem [#allocation2], %s982
        $region108: #{mlp_forward.1} parent=103 // pred_fallthru
          _
      $region104: #{mlp_forward.1} parent=5 // pred_fallthru
        _
    $region6: #{mlp_forward.1} parent=1 // loop_footer
      %s17 = sadd.s32 1, %s13
    $region7: #{mlp_forward.1} parent=1 // loop_footer_branch
      %12 = sbr.rel target = $region3
    $region8: #{mlp_forward.1} parent=1 // loop_exit
      _

</llo_original>
